<compile_context>
chip_gen: v6e
topology: v6e:2x2x1
jax: 0.10.0
libtpu: 0.0.40
codegen_flags: <defaults>
</compile_context>

<pallas_src>
import functools
import math

import jax
import jax.numpy as jnp
from jax import lax
from jax.experimental import pallas as pl
from jax.experimental.pallas import tpu as pltpu


def _round_up(x, m):
    return ((x + m - 1) // m) * m


def _prep_kernel(v_ref, kinv_ref, gii_ref, m_ref, obj_ref, *, dof):
    """One-shot: G from V, M = Kii_inv @ G, and the objective."""
    P = v_ref.shape[0]
    inv_sqrt_p = 1.0 / math.sqrt(float(P))

    V = v_ref[...]            # (P, P)
    Kinv = kinv_ref[...]      # (P, P)

    r = lax.broadcasted_iota(jnp.int32, (P, P), 0)
    c = lax.broadcasted_iota(jnp.int32, (P, P), 1)
    diag_mask = r == c

    # chol_G = (tril(V, -1) + diag(exp(diag(V)))) / sqrt(P)
    chol = jnp.where(r > c, V, jnp.where(diag_mask, jnp.exp(V), 0.0)) * inv_sqrt_p
    G = jnp.dot(chol, chol.T, preferred_element_type=jnp.float32)
    M = jnp.dot(Kinv, G, preferred_element_type=jnp.float32)

    gii_ref[...] = G
    m_ref[...] = M

    # objective: -0.5*dof*(-log_det_term + trace_term - P)
    # trace(Kinv @ G) == sum(Kinv * G) since G is symmetric (no transpose).
    trace_term = jnp.sum(Kinv * G)
    # 2*sum(log(diag(V))); off-diagonals replaced by 1 so log() contributes 0.
    log_det_term = 2.0 * jnp.sum(jnp.log(jnp.where(diag_mask, V, 1.0)))
    obj = -0.5 * dof * (-log_det_term + trace_term - float(P))
    obj_ref[...] = jnp.reshape(obj, (1, 1))


def _tile_kernel(kinv_ref, m_ref, kti_ref, kt_ref, gti_ref, gt_ref):
    """Per row-tile: A = Kti@Kinv, Gti = Kti@M, gt = kt + rowsum(Gti*A - A*Kti)."""
    Kinv = kinv_ref[...]                 # (P, P), resident across grid steps
    M = m_ref[...]                       # (P, P), resident across grid steps
    Kti = kti_ref[...]                   # (TN, P)
    kt = kt_ref[...]                     # (TN, 1)

    # Both big matmuls depend only on the freshly loaded Kti tile (reassociated
    # Gti = (Kti @ Kinv) @ G == Kti @ (Kinv @ G) = Kti @ M) -> better MXU overlap.
    A = jnp.dot(Kti, Kinv, preferred_element_type=jnp.float32)
    Gti = jnp.dot(Kti, M, preferred_element_type=jnp.float32)

    gti_ref[...] = Gti
    # gt = sum(Gti*A, -1) + (kt - sum(A*Kti, -1)); fused into a single reduce.
    gt_ref[...] = kt + jnp.sum(Gti * A - A * Kti, axis=-1, keepdims=True)


def gram_layer_forward(K_ii, K_ti, K_t, dof, *, tile_rows=2048):
    """First-call forward of GramLayerTricks1and2Cholesky.

    Returns (Gii, Gti, gt, computed_obj) matching the PyTorch StructMat output
    plus the stored objective.
    """
    P = K_ii.shape[0]
    K_ii = K_ii.astype(jnp.float32)
    Kti_flat = K_ti.astype(jnp.float32).reshape(-1, P)
    kt_flat = K_t.astype(jnp.float32).reshape(-1, 1)
    N = Kti_flat.shape[0]

    # ---- glue (plain JAX): inited=False branch + InverseLogDet forward ----
    # V.data = cholesky(K.ii) * P**0.5 ; Kii_inv = cholesky_inverse(cholesky(K.ii))
    L = jnp.linalg.cholesky(K_ii)
    V = L * math.sqrt(float(P))
    Kii_inv = jax.scipy.linalg.cho_solve((L, True), jnp.eye(P, dtype=jnp.float32))

    # ---- prep kernel: G, M = Kinv @ G, objective (tiny) ----------------------
    prep = functools.partial(_prep_kernel, dof=float(dof))
    Gii, M, obj = pl.pallas_call(
        prep,
        grid=(1,),
        in_specs=[
            pl.BlockSpec((P, P), lambda i: (0, 0)),
            pl.BlockSpec((P, P), lambda i: (0, 0)),
        ],
        out_specs=(
            pl.BlockSpec((P, P), lambda i: (0, 0)),
            pl.BlockSpec((P, P), lambda i: (0, 0)),
            pl.BlockSpec((1, 1), lambda i: (0, 0)),
        ),
        out_shape=(
            jax.ShapeDtypeStruct((P, P), jnp.float32),
            jax.ShapeDtypeStruct((P, P), jnp.float32),
            jax.ShapeDtypeStruct((1, 1), jnp.float32),
        ),
        compiler_params=pltpu.CompilerParams(
            dimension_semantics=("arbitrary",)),
        cost_estimate=pl.CostEstimate(
            flops=int(4 * P * P * P + 6 * P * P),
            transcendentals=int(2 * P),
            bytes_accessed=int(5 * P * P * 4)),
    )(V, Kii_inv)

    # ---- main kernel: tiled + pipelined over the N rows ----------------------
    TN = min(int(tile_rows), _round_up(N, 8))
    TN = _round_up(TN, 8)
    N_pad = _round_up(N, TN)
    if N_pad != N:
        Kti_p = jnp.pad(Kti_flat, ((0, N_pad - N), (0, 0)))
        kt_p = jnp.pad(kt_flat, ((0, N_pad - N), (0, 0)))
    else:
        Kti_p, kt_p = Kti_flat, kt_flat
    num_tiles = N_pad // TN

    Gti_p, gt_p = pl.pallas_call(
        _tile_kernel,
        grid=(num_tiles,),
        in_specs=[
            pl.BlockSpec((P, P), lambda i: (0, 0)),    # Kii_inv (resident)
            pl.BlockSpec((P, P), lambda i: (0, 0)),    # M = Kinv @ G (resident)
            pl.BlockSpec((TN, P), lambda i: (i, 0)),   # Kti tile
            pl.BlockSpec((TN, 1), lambda i: (i, 0)),   # kt tile
        ],
        out_specs=(
            pl.BlockSpec((TN, P), lambda i: (i, 0)),   # Gti tile
            pl.BlockSpec((TN, 1), lambda i: (i, 0)),   # gt tile
        ),
        out_shape=(
            jax.ShapeDtypeStruct((N_pad, P), jnp.float32),
            jax.ShapeDtypeStruct((N_pad, 1), jnp.float32),
        ),
        compiler_params=pltpu.CompilerParams(
            dimension_semantics=("parallel",)),        # megacore-shardable (v7x)
        cost_estimate=pl.CostEstimate(
            flops=int(4 * N_pad * P * P + 4 * N_pad * P),
            transcendentals=0,
            bytes_accessed=int(4 * (2 * N_pad * P + 2 * N_pad + 2 * P * P))),
    )(Kii_inv, M, Kti_p, kt_p)

    Gti = Gti_p[:N].reshape(K_ti.shape)
    gt = gt_p[:N, 0].reshape(K_t.shape)
    return Gii, Gti, gt, obj[0, 0]


def _reference(K_ii, K_ti, K_t, dof):
    """Pure-JAX mirror of the PyTorch forward, for verification."""
    P = K_ii.shape[0]
    L = jnp.linalg.cholesky(K_ii)
    V = L * math.sqrt(float(P))
    Kinv = jax.scipy.linalg.cho_solve((L, True), jnp.eye(P, dtype=K_ii.dtype))
    chol = (jnp.tril(V, -1) + jnp.diag(jnp.exp(jnp.diag(V)))) / math.sqrt(float(P))
    G = chol @ chol.T
    Kti = K_ti.reshape(-1, P)
    kt = K_t.reshape(-1)
    A = Kti @ Kinv
    ktt_i = kt - jnp.sum(A * Kti, -1)
    Gti = A @ G
    gt = jnp.sum(Gti * A, -1) + ktt_i
    trace_term = jnp.trace(Kinv @ G)
    log_det_term = 2.0 * jnp.sum(jnp.log(jnp.diag(V)))
    obj = -0.5 * dof * (-log_det_term + trace_term - P)
    return G, Gti.reshape(K_ti.shape), gt.reshape(K_t.shape), obj


if __name__ == "__main__":
    P, B, S = 32, 2, 8          # N = B*S = 16 test points, P = 32 inducing
    dof = 3.0

    key = jax.random.PRNGKey(0)
    # Build a valid joint covariance over (P inducing + N test) points so the
    # Schur-complement diagonal (ktt_i, gt) stays non-negative, matching the
    # module's `assert (-1e-10 < gt_flat).all()`.
    N = B * S
    F = jax.random.normal(key, (P + N, 2 * (P + N)), dtype=jnp.float32)
    C = F @ F.T / (2.0 * (P + N)) + 0.1 * jnp.eye(P + N, dtype=jnp.float32)
    K_ii = C[:P, :P]                                 # (P, P)
    K_ti = C[P:, :P].reshape(B, S, P)                # (B, S, P)
    K_t = jnp.diagonal(C)[P:].reshape(B, S)          # (B, S)

    Gii, Gti, gt, obj = jax.block_until_ready(
        gram_layer_forward(K_ii, K_ti, K_t, dof))

    # sanity / correctness check against the pure-JAX reference
    Gii_r, Gti_r, gt_r, obj_r = _reference(K_ii, K_ti, K_t, dof)
    assert bool(jnp.all(gt > -1e-10))
    assert jnp.allclose(Gii, Gii_r, rtol=2e-3, atol=2e-3)
    assert jnp.allclose(Gti, Gti_r, rtol=2e-3, atol=2e-3)
    assert jnp.allclose(gt, gt_r, rtol=2e-3, atol=2e-3)
    assert jnp.allclose(obj, obj_r, rtol=2e-3, atol=2e-3)

    print("KERNEL_OK")
</pallas_src>

<mosaic_0001>
module attributes {stable_mosaic.version = 11 : i64} {
  func.func @_prep_kernel(%arg0: i32, %arg1: memref<32x32xf32, #tpu.memory_space<vmem>>, %arg2: memref<32x32xf32, #tpu.memory_space<vmem>>, %arg3: memref<32x32xf32, #tpu.memory_space<vmem>>, %arg4: memref<32x32xf32, #tpu.memory_space<vmem>>, %arg5: memref<1x1xf32, #tpu.memory_space<vmem>>) attributes {dimension_semantics = [#tpu.dimension_semantics<arbitrary>], iteration_bounds = array<i64: 1>, scalar_prefetch = 0 : i64, scratch_operands = 0 : i64, tpu.core_type = #tpu.core_type<tc>, window_params = [{pipeline_mode = #tpu.pipeline_mode<synchronous>, transform_indices = @transform_0, window_bounds = array<i64: 32, 32>}, {pipeline_mode = #tpu.pipeline_mode<synchronous>, transform_indices = @transform_1, window_bounds = array<i64: 32, 32>}, {pipeline_mode = #tpu.pipeline_mode<synchronous>, transform_indices = @transform_2, window_bounds = array<i64: 32, 32>}, {pipeline_mode = #tpu.pipeline_mode<synchronous>, transform_indices = @transform_3, window_bounds = array<i64: 32, 32>}, {pipeline_mode = #tpu.pipeline_mode<synchronous>, transform_indices = @transform_4, window_bounds = array<i64: 1, 1>}]} {
    %c0 = arith.constant 0 : index
    %c0_0 = arith.constant 0 : index
    %0 = vector.load %arg1[%c0, %c0_0] : memref<32x32xf32, #tpu.memory_space<vmem>>, vector<32x32xf32>
    %c0_1 = arith.constant 0 : index
    %c0_2 = arith.constant 0 : index
    %1 = vector.load %arg2[%c0_1, %c0_2] : memref<32x32xf32, #tpu.memory_space<vmem>>, vector<32x32xf32>
    %2 = tpu.iota {dimensions = array<i32: 0>} : vector<32x32xi32>
    %3 = tpu.iota {dimensions = array<i32: 1>} : vector<32x32xi32>
    %4 = arith.cmpi eq, %2, %3 : vector<32x32xi32>
    %5 = arith.cmpi sgt, %2, %3 : vector<32x32xi32>
    %6 = math.exp %0 : vector<32x32xf32>
    %cst = arith.constant 0.000000e+00 : f32
    %7 = vector.broadcast %cst : f32 to vector<32x32xf32>
    %8 = arith.select %4, %6, %7 : vector<32x32xi1>, vector<32x32xf32>
    %9 = arith.select %5, %0, %8 : vector<32x32xi1>, vector<32x32xf32>
    %cst_3 = arith.constant 0.176776692 : f32
    %10 = vector.broadcast %cst_3 : f32 to vector<32x32xf32>
    %11 = arith.mulf %9, %10 : vector<32x32xf32>
    %12 = tpu.transpose %11, [1, 0] : vector<32x32xf32> -> vector<32x32xf32>
    %cst_4 = arith.constant dense<0.000000e+00> : vector<32x32xf32>
    %13 = tpu.matmul %11, %12, %cst_4 {dimension_numbers = #tpu.dot_dimension_numbers<[1], [0], [0], [1], [0, 0, 1, 1], [], []>} : vector<32x32xf32>, vector<32x32xf32>, vector<32x32xf32> -> vector<32x32xf32>
    %cst_5 = arith.constant dense<0.000000e+00> : vector<32x32xf32>
    %14 = tpu.matmul %1, %13, %cst_5 {dimension_numbers = #tpu.dot_dimension_numbers<[1], [0], [0], [1], [0, 0, 1, 1], [], []>} : vector<32x32xf32>, vector<32x32xf32>, vector<32x32xf32> -> vector<32x32xf32>
    %c0_6 = arith.constant 0 : index
    %c0_7 = arith.constant 0 : index
    %15 = vector.load %arg3[%c0_6, %c0_7] : memref<32x32xf32, #tpu.memory_space<vmem>>, vector<32x32xf32>
    tpu.vector_store %arg3[%c0_6, %c0_7], %13 {strides = array<i32>} : memref<32x32xf32, #tpu.memory_space<vmem>>, vector<32x32xf32>,
    %c0_8 = arith.constant 0 : index
    %c0_9 = arith.constant 0 : index
    %16 = vector.load %arg4[%c0_8, %c0_9] : memref<32x32xf32, #tpu.memory_space<vmem>>, vector<32x32xf32>
    tpu.vector_store %arg4[%c0_8, %c0_9], %14 {strides = array<i32>} : memref<32x32xf32, #tpu.memory_space<vmem>>, vector<32x32xf32>,
    %17 = arith.mulf %1, %13 : vector<32x32xf32>
    %18 = vector.shape_cast %17 : vector<32x32xf32> to vector<1x32x32xf32>
    %cst_10 = arith.constant dense<0.000000e+00> : vector<1xf32>
    %19 = vector.multi_reduction <add>, %18, %cst_10 [1, 2] : vector<1x32x32xf32> to vector<1xf32>
    %20 = vector.shape_cast %19 : vector<1xf32> to vector<1x1x1xf32>
    %21 = vector.extract %20[0, 0, 0] : f32 from vector<1x1x1xf32>
    %cst_11 = arith.constant 1.000000e+00 : f32
    %22 = vector.broadcast %cst_11 : f32 to vector<32x32xf32>
    %23 = arith.select %4, %0, %22 : vector<32x32xi1>, vector<32x32xf32>
    %24 = math.log %23 : vector<32x32xf32>
    %25 = vector.shape_cast %24 : vector<32x32xf32> to vector<1x32x32xf32>
    %cst_12 = arith.constant dense<0.000000e+00> : vector<1xf32>
    %26 = vector.multi_reduction <add>, %25, %cst_12 [1, 2] : vector<1x32x32xf32> to vector<1xf32>
    %27 = vector.shape_cast %26 : vector<1xf32> to vector<1x1x1xf32>
    %28 = vector.extract %27[0, 0, 0] : f32 from vector<1x1x1xf32>
    %cst_13 = arith.constant 2.000000e+00 : f32
    %29 = arith.mulf %cst_13, %28 : f32
    %cst_14 = arith.constant 0.000000e+00 : f32
    %30 = arith.subf %cst_14, %29 : f32
    %31 = arith.addf %30, %21 : f32
    %cst_15 = arith.constant 3.200000e+01 : f32
    %32 = arith.subf %31, %cst_15 : f32
    %cst_16 = arith.constant -1.500000e+00 : f32
    %33 = arith.mulf %cst_16, %32 : f32
    %34 = vector.broadcast %33 : f32 to vector<1x1xf32>
    %c0_17 = arith.constant 0 : index
    %c0_18 = arith.constant 0 : index
    %35 = vector.load %arg5[%c0_17, %c0_18] : memref<1x1xf32, #tpu.memory_space<vmem>>, vector<1x1xf32>
    tpu.vector_store %arg5[%c0_17, %c0_18], %34 {strides = array<i32>} : memref<1x1xf32, #tpu.memory_space<vmem>>, vector<1x1xf32>,
    return
  }
  func.func @transform_0(%arg0: i32) -> (i32, i32) {
    %c0_i32 = arith.constant 0 : i32
    %c0_i32_0 = arith.constant 0 : i32
    %c0_i32_1 = arith.constant 0 : i32
    return %c0_i32, %c0_i32_0 : i32, i32
  }
  func.func @transform_1(%arg0: i32) -> (i32, i32) {
    %c0_i32 = arith.constant 0 : i32
    %c0_i32_0 = arith.constant 0 : i32
    %c0_i32_1 = arith.constant 0 : i32
    return %c0_i32, %c0_i32_0 : i32, i32
  }
  func.func @transform_2(%arg0: i32) -> (i32, i32) {
    %c0_i32 = arith.constant 0 : i32
    %c0_i32_0 = arith.constant 0 : i32
    %c0_i32_1 = arith.constant 0 : i32
    return %c0_i32, %c0_i32_0 : i32, i32
  }
  func.func @transform_3(%arg0: i32) -> (i32, i32) {
    %c0_i32 = arith.constant 0 : i32
    %c0_i32_0 = arith.constant 0 : i32
    %c0_i32_1 = arith.constant 0 : i32
    return %c0_i32, %c0_i32_0 : i32, i32
  }
  func.func @transform_4(%arg0: i32) -> (i32, i32) {
    %c0_i32 = arith.constant 0 : i32
    %c0_i32_0 = arith.constant 0 : i32
    %c0_i32_1 = arith.constant 0 : i32
    return %c0_i32, %c0_i32_0 : i32, i32
  }
}

</mosaic_0001>

<llo_original>
// kernel: tpu_custom_call.1
$region0: #{tpu_custom_call.1}
  #allocation0 [shape = 'u32[]', space=smem, size = 0x4, offset = 0x4, fixed_abs, tag = 'smem constant byte address 0x4 - core index']
  #allocation1 [shape = 'u32[144,128]{1,0:T(1,128)}', space=vmem, size = 0x12000, scoped, tag = 'internal scratch']
  %s0 = inlined_call_operand.hbm [shape: f32[32,32], index: 0, kind: input, shape index: {}]
  %s1 = inlined_call_operand.hbm [shape: f32[32,32], index: 1, kind: input, shape index: {}]
  %s2 = inlined_call_operand.hbm [shape: f32[32,32], index: 2, kind: output, shape index: {0}]
  %s3 = inlined_call_operand.hbm [shape: f32[32,32], index: 3, kind: output, shape index: {1}]
  %s4 = inlined_call_operand.hbm [shape: f32[1,1], index: 4, kind: output, shape index: {2}]
  %5 = xla_tuple %s2, %s3, %s4
  %s6 = sld [smem:[#allocation0]]
  $region42: #{tpu_custom_call.1} parent=0
    _
  %s8 = ssub.s32 1, %s6
  %s9 = scalar_select 0, %s8, %s6
  $region1: #{tpu_custom_call.1} parent=0
    #allocation2 [shape = 'u8[16384]{0}', space=vmem, size = 0x4000, scoped, tag = 'input window, operand 0, single buffered']
    #allocation3 [shape = 's32[1]{0}', space=sflag, size = 0x4, scoped, tag = 'scoped memory for tpu_custom_call.1']
    #allocation4 [shape = 's32[1]{0}', space=sflag, size = 0x4, scoped, tag = 'scoped memory for tpu_custom_call.1']
    #allocation5 [shape = 'u8[16384]{0}', space=vmem, size = 0x4000, scoped, tag = 'input window, operand 1, single buffered']
    #allocation6 [shape = 's32[1]{0}', space=sflag, size = 0x4, scoped, tag = 'scoped memory for tpu_custom_call.1']
    #allocation7 [shape = 'u8[16384]{0}', space=vmem, size = 0x4000, scoped, tag = 'output window, operand 0, single buffered']
    #allocation8 [shape = 'u8[16384]{0}', space=vmem, size = 0x4000, scoped, tag = 'output window, operand 1, single buffered']
    #allocation9 [shape = 's32[1]{0}', space=sflag, size = 0x4, scoped, tag = 'scoped memory for tpu_custom_call.1']
    #allocation10 [shape = 'u8[512]{0}', space=vmem, size = 0x400, scoped, tag = 'output window, operand 2, single buffered']
    %10 = vsyncpa [#allocation3], 0
    %11 = vsyncpa [#allocation6], 0
    %12 = vsyncpa [#allocation4], 0
    %13 = vsyncpa [#allocation9], 0
    // Predicated region
    $region2: #{tpu_custom_call.1} parent=1 // pred_check
      _
    $region3: #{tpu_custom_call.1} parent=1 // pred_check_branch
      %15 = sbr.rel (0) target = $region5
    $region4: #{tpu_custom_call.1} parent=1 // pred_region
      %s17 = ssub.s32 512, 512
      %18 = vsyncadd [#allocation3], %s17
      %s19 = sshll.u32 [#allocation2], 4
      %s20 = int_to_ptr.vmem [resolvable:$true] %s19
      %25 = dma.hbm_to_vmem [thread:$0]  %s0, 512, %s20, [#allocation3], 128, 128, 8
    $region5: #{tpu_custom_call.1} parent=1 // pred_fallthru
      _
    // Predicated region
    $region6: #{tpu_custom_call.1} parent=1 // pred_check
      _
    $region7: #{tpu_custom_call.1} parent=1 // pred_check_branch
      %27 = sbr.rel (0) target = $region9
    $region8: #{tpu_custom_call.1} parent=1 // pred_region
      %s29 = ssub.s32 512, 512
      %30 = vsyncadd [#allocation6], %s29
      %s31 = sshll.u32 [#allocation5], 4
      %s32 = int_to_ptr.vmem [resolvable:$true] %s31
      %37 = dma.hbm_to_vmem [thread:$0]  %s1, 512, %s32, [#allocation6], 128, 128, 8
    $region9: #{tpu_custom_call.1} parent=1 // pred_fallthru
      _
    // Predicated region
    $region10: #{tpu_custom_call.1} parent=1 // pred_check
      _
    $region11: #{tpu_custom_call.1} parent=1 // pred_check_branch
      %39 = sbr.rel (0) target = $region13
    $region12: #{tpu_custom_call.1} parent=1 // pred_region
      %40 = dma.done [#allocation3], 512
    $region13: #{tpu_custom_call.1} parent=1 // pred_fallthru
      _
    // Predicated region
    $region14: #{tpu_custom_call.1} parent=1 // pred_check
      _
    $region15: #{tpu_custom_call.1} parent=1 // pred_check_branch
      %42 = sbr.rel (0) target = $region17
    $region16: #{tpu_custom_call.1} parent=1 // pred_region
      %43 = dma.done [#allocation6], 512
    $region17: #{tpu_custom_call.1} parent=1 // pred_fallthru
      _
    %v44 = vld [vmem:[#allocation2] sm:$0xff]
    %v45 = vld [vmem:[#allocation2 + $0x8] sm:$0xff]
    %v46 = vld [vmem:[#allocation2 + $0x10] sm:$0xff]
    %v47 = vld [vmem:[#allocation2 + $0x18] sm:$0xff]
    %v48 = vld [vmem:[#allocation5] sm:$0xff]
    %v49 = vld [vmem:[#allocation5 + $0x8] sm:$0xff]
    %v50 = vld [vmem:[#allocation5 + $0x10] sm:$0xff]
    %v51 = vld [vmem:[#allocation5 + $0x18] sm:$0xff]
    %v52 = vlaneseq
    %v53 = vshrl.u32 %v52, 7
    %v54 = vadd.s32 %v53, 8
    %v55 = vadd.s32 %v53, 16
    %v56 = vadd.s32 %v53, 24
    %v57 = vlaneseq
    %v58 = vand.u32 %v57, 127
    %vm59 = vcmp.eq.s32.totalorder %v53, %v58
    %vm60 = vcmp.eq.s32.totalorder %v54, %v58
    %vm61 = vcmp.eq.s32.totalorder %v55, %v58
    %vm62 = vcmp.eq.s32.totalorder %v56, %v58
    %vm63 = vcmp.gt.s32.totalorder %v53, %v58
    %vm64 = vcmp.gt.s32.totalorder %v54, %v58
    %vm65 = vcmp.gt.s32.totalorder %v55, %v58
    %vm66 = vcmp.gt.s32.totalorder %v56, %v58
    %v67 = vmul.f32 %v44, 1.442695
    %v68 = vpow.pop %v67
    %v69 = vmul.f32 %v45, 1.442695
    %v70 = vpow.pop %v69
    %v71 = vmul.f32 %v46, 1.442695
    %v72 = vpow.pop %v71
    %v73 = vmul.f32 %v47, 1.442695
    %v74 = vpow.pop %v73
    %v75 = vsel %vm59, %v68, 0.0
    %v76 = vsel %vm60, %v70, 0.0
    %v77 = vsel %vm61, %v72, 0.0
    %v78 = vsel %vm62, %v74, 0.0
    %v79 = vsel %vm63, %v44, %v75
    %v80 = vsel %vm64, %v45, %v76
    %v81 = vsel %vm65, %v46, %v77
    %v82 = vsel %vm66, %v47, %v78
    %v83 = vmul.f32 %v79, 0.17677669
    %v84 = vmul.f32 %v80, 0.17677669
    %v85 = vmul.f32 %v81, 0.17677669
    %v86 = vmul.f32 %v82, 0.17677669
    %vm87 = vcmask 261120
    %v89 = vsel %vm87, %v83, 0
    %v92 = vsel %vm87, %v84, 0
    %v95 = vsel %vm87, %v85, 0
    %v98 = vsel %vm87, %v86, 0
    %100 = vmatprep.subr.mxu0 0.0
    %101 = vmatpush1.xpose.msra.mxu0 0.0
    %102 = vmatprep.subr.mxu0 0.0
    %103 = vmatpush1.xpose.msra.mxu0 0.0
    %104 = vmatprep.subr.mxu0 0.0
    %105 = vmatpush1.xpose.msra.mxu0 0.0
    %106 = vmatprep.subr.mxu0 0.0
    %107 = vmatpush1.xpose.msra.mxu0 0.0
    %108 = vmatprep.subr.mxu0 0.0
    %109 = vmatpush1.xpose.msra.mxu0 0.0
    %110 = vmatprep.subr.mxu0 0.0
    %111 = vmatpush1.xpose.msra.mxu0 0.0
    %112 = vmatprep.subr.mxu0 0.0
    %113 = vmatpush1.xpose.msra.mxu0 0.0
    %114 = vmatprep.subr.mxu0 0.0
    %115 = vmatpush1.xpose.msra.mxu0 0.0
    %116 = vmatprep.subr.mxu0 0.0
    %117 = vmatpush1.xpose.msra.mxu0 0.0
    %118 = vmatprep.subr.mxu0 0.0
    %119 = vmatpush1.xpose.msra.mxu0 0.0
    %120 = vmatprep.subr.mxu0 0.0
    %121 = vmatpush1.xpose.msra.mxu0 0.0
    %122 = vmatprep.subr.mxu0 0.0
    %123 = vmatpush1.xpose.msra.mxu0 0.0
    %124 = vmatprep.subr.mxu0 0.0
    %125 = vmatpush1.xpose.msra.mxu0 %v98
    %126 = vmatprep.subr.mxu0 0.0
    %127 = vmatpush1.xpose.msra.mxu0 %v95
    %128 = vmatprep.subr.mxu0 0.0
    %129 = vmatpush1.xpose.msra.mxu0 %v92
    %130 = vmatprep.subr.mxu0 0.0
    %131 = vmatpush1.xpose.msra.mxu0 %v89
    %132 = vmatprep.subr.mxu0 0.0
    %133 = vmatpush2.xpose.msra.mxu0 0.0
    %134 = vmatprep.subr.mxu0 0.0
    %135 = vmatpush2.xpose.msra.mxu0 0.0
    %136 = vmatprep.subr.mxu0 0.0
    %137 = vmatpush2.xpose.msra.mxu0 0.0
    %138 = vmatprep.subr.mxu0 0.0
    %139 = vmatpush2.xpose.msra.mxu0 0.0
    %140 = vmatprep.subr.mxu0 0.0
    %141 = vmatpush2.xpose.msra.mxu0 0.0
    %142 = vmatprep.subr.mxu0 0.0
    %143 = vmatpush2.xpose.msra.mxu0 0.0
    %144 = vmatprep.subr.mxu0 0.0
    %145 = vmatpush2.xpose.msra.mxu0 0.0
    %146 = vmatprep.subr.mxu0 0.0
    %147 = vmatpush2.xpose.msra.mxu0 0.0
    %148 = vmatprep.subr.mxu0 0.0
    %149 = vmatpush2.xpose.msra.mxu0 0.0
    %150 = vmatprep.subr.mxu0 0.0
    %151 = vmatpush2.xpose.msra.mxu0 0.0
    %152 = vmatprep.subr.mxu0 0.0
    %153 = vmatpush2.xpose.msra.mxu0 0.0
    %154 = vmatprep.subr.mxu0 0.0
    %155 = vmatpush2.xpose.msra.mxu0 0.0
    %156 = vmatprep.subr.mxu0 0.0
    %157 = vmatpush2.xpose.msra.mxu0 0.0
    %158 = vmatprep.subr.mxu0 0.0
    %159 = vmatpush2.xpose.msra.mxu0 0.0
    %160 = vmatprep.subr.mxu0 0.0
    %161 = vmatpush2.xpose.msra.mxu0 0.0
    %162 = vmatprep.subr.mxu0 0.0
    %163 = vmatpush2.xpose.msra.mxu0 0.0
    %164 = vmatprep.mubr.f32.mxu0 0.0
    %165 = vmatmul.mubr.f32.gmra.mxu0 %v89
    %v166 = vpop.f32.mrf.mxu0
    %v167 = vadd.f32 0.0, %v166
    %v168 = vpop.f32.mrf.mxu0
    %169 = vmatprep.mubr.f32.mxu0 0.0
    %170 = vmatmul.mubr.f32.gmra.mxu0 %v92
    %v171 = vpop.f32.mrf.mxu0
    %v172 = vadd.f32 0.0, %v171
    %v173 = vpop.f32.mrf.mxu0
    %174 = vmatprep.mubr.f32.mxu0 0.0
    %175 = vmatmul.mubr.f32.gmra.mxu0 %v95
    %v176 = vpop.f32.mrf.mxu0
    %v177 = vadd.f32 0.0, %v176
    %v178 = vpop.f32.mrf.mxu0
    %179 = vmatprep.mubr.f32.mxu0 0.0
    %180 = vmatmul.mubr.f32.gmra.mxu0 %v98
    %v181 = vpop.f32.mrf.mxu0
    %v182 = vadd.f32 0.0, %v181
    %v183 = vpop.f32.mrf.mxu0
    %184 = vdwg.mxu0
    %v186 = vsel %vm87, %v48, 0
    %v189 = vsel %vm87, %v49, 0
    %v192 = vsel %vm87, %v50, 0
    %v195 = vsel %vm87, %v51, 0
    %197 = vmatprep.subr.mxu0 0.0
    %198 = vmatpush1.msra.mxu0 0.0
    %199 = vmatprep.subr.mxu0 0.0
    %200 = vmatpush1.msra.mxu0 0.0
    %201 = vmatprep.subr.mxu0 0.0
    %202 = vmatpush1.msra.mxu0 0.0
    %203 = vmatprep.subr.mxu0 0.0
    %204 = vmatpush1.msra.mxu0 0.0
    %205 = vmatprep.subr.mxu0 0.0
    %206 = vmatpush1.msra.mxu0 0.0
    %207 = vmatprep.subr.mxu0 0.0
    %208 = vmatpush1.msra.mxu0 0.0
    %209 = vmatprep.subr.mxu0 0.0
    %210 = vmatpush1.msra.mxu0 0.0
    %211 = vmatprep.subr.mxu0 0.0
    %212 = vmatpush1.msra.mxu0 0.0
    %213 = vmatprep.subr.mxu0 0.0
    %214 = vmatpush1.msra.mxu0 0.0
    %215 = vmatprep.subr.mxu0 0.0
    %216 = vmatpush1.msra.mxu0 0.0
    %217 = vmatprep.subr.mxu0 0.0
    %218 = vmatpush1.msra.mxu0 0.0
    %219 = vmatprep.subr.mxu0 0.0
    %220 = vmatpush1.msra.mxu0 0.0
    %221 = vmatprep.subr.mxu0 0.0
    %222 = vmatpush1.msra.mxu0 %v182
    %223 = vmatprep.subr.mxu0 0.0
    %224 = vmatpush1.msra.mxu0 %v177
    %225 = vmatprep.subr.mxu0 0.0
    %226 = vmatpush1.msra.mxu0 %v172
    %227 = vmatprep.subr.mxu0 0.0
    %228 = vmatpush1.msra.mxu0 %v167
    %229 = vmatprep.subr.mxu0 0.0
    %230 = vmatpush2.msra.mxu0 0.0
    %231 = vmatprep.subr.mxu0 0.0
    %232 = vmatpush2.msra.mxu0 0.0
    %233 = vmatprep.subr.mxu0 0.0
    %234 = vmatpush2.msra.mxu0 0.0
    %235 = vmatprep.subr.mxu0 0.0
    %236 = vmatpush2.msra.mxu0 0.0
    %237 = vmatprep.subr.mxu0 0.0
    %238 = vmatpush2.msra.mxu0 0.0
    %239 = vmatprep.subr.mxu0 0.0
    %240 = vmatpush2.msra.mxu0 0.0
    %241 = vmatprep.subr.mxu0 0.0
    %242 = vmatpush2.msra.mxu0 0.0
    %243 = vmatprep.subr.mxu0 0.0
    %244 = vmatpush2.msra.mxu0 0.0
    %245 = vmatprep.subr.mxu0 0.0
    %246 = vmatpush2.msra.mxu0 0.0
    %247 = vmatprep.subr.mxu0 0.0
    %248 = vmatpush2.msra.mxu0 0.0
    %249 = vmatprep.subr.mxu0 0.0
    %250 = vmatpush2.msra.mxu0 0.0
    %251 = vmatprep.subr.mxu0 0.0
    %252 = vmatpush2.msra.mxu0 0.0
    %253 = vmatprep.subr.mxu0 0.0
    %254 = vmatpush2.msra.mxu0 0.0
    %255 = vmatprep.subr.mxu0 0.0
    %256 = vmatpush2.msra.mxu0 0.0
    %257 = vmatprep.subr.mxu0 0.0
    %258 = vmatpush2.msra.mxu0 0.0
    %259 = vmatprep.subr.mxu0 0.0
    %260 = vmatpush2.msra.mxu0 0.0
    %261 = vmatprep.mubr.f32.mxu0 0.0
    %262 = vmatmul.mubr.f32.gmra.mxu0 %v186
    %v263 = vpop.f32.mrf.mxu0
    %v264 = vadd.f32 0.0, %v263
    %v265 = vpop.f32.mrf.mxu0
    %266 = vmatprep.mubr.f32.mxu0 0.0
    %267 = vmatmul.mubr.f32.gmra.mxu0 %v189
    %v268 = vpop.f32.mrf.mxu0
    %v269 = vadd.f32 0.0, %v268
    %v270 = vpop.f32.mrf.mxu0
    %271 = vmatprep.mubr.f32.mxu0 0.0
    %272 = vmatmul.mubr.f32.gmra.mxu0 %v192
    %v273 = vpop.f32.mrf.mxu0
    %v274 = vadd.f32 0.0, %v273
    %v275 = vpop.f32.mrf.mxu0
    %276 = vmatprep.mubr.f32.mxu0 0.0
    %277 = vmatmul.mubr.f32.gmra.mxu0 %v195
    %v278 = vpop.f32.mrf.mxu0
    %v279 = vadd.f32 0.0, %v278
    %v280 = vpop.f32.mrf.mxu0
    %281 = vdwg.mxu0
    %282 = vst.msk [vmem:[#allocation7] sm:$0xff] %vm87, %v167
    %283 = vst.msk [vmem:[#allocation7 + $0x8] sm:$0xff] %vm87, %v172
    %284 = vst.msk [vmem:[#allocation7 + $0x10] sm:$0xff] %vm87, %v177
    %285 = vst.msk [vmem:[#allocation7 + $0x18] sm:$0xff] %vm87, %v182
    %286 = vst.msk [vmem:[#allocation8] sm:$0xff] %vm87, %v264
    %287 = vst.msk [vmem:[#allocation8 + $0x8] sm:$0xff] %vm87, %v269
    %288 = vst.msk [vmem:[#allocation8 + $0x10] sm:$0xff] %vm87, %v274
    %289 = vst.msk [vmem:[#allocation8 + $0x18] sm:$0xff] %vm87, %v279
    %v290 = vmul.f32 %v48, %v167
    %v291 = vmul.f32 %v49, %v172
    %v292 = vmul.f32 %v50, %v177
    %v293 = vmul.f32 %v51, %v182
    %v294 = vsel %vm87, %v290, 0.0
    %v295 = vsel %vm87, %v291, 0.0
    %v296 = vadd.f32 %v294, %v295
    %v297 = vsel %vm87, %v292, 0.0
    %v298 = vadd.f32 %v296, %v297
    %v299 = vsel %vm87, %v293, 0.0
    %v300 = vadd.f32 %v298, %v299
    %301 = vadd.xlane.f32.xlu0 %v300
    %v302 = vpop.xlane.xlu0 %301
    %v303 = vrot.slane %v302, 4
    %v304 = vadd.f32 %v302, %v303
    %v305 = vrot.slane %v304, 2
    %v306 = vadd.f32 %v304, %v305
    %v307 = vrot.slane %v306, 1
    %v308 = vadd.f32 %v306, %v307
    %s309 = vtos %v308
    %v310 = vsel %vm59, %v44, 1.0
    %v311 = vsel %vm60, %v45, 1.0
    %v312 = vsel %vm61, %v46, 1.0
    %v313 = vsel %vm62, %v47, 1.0
    %v314 = vlog2.pop %v310
    %v315 = vmul.f32 %v314, 0.6931472
    %v316 = vlog2.pop %v311
    %v317 = vmul.f32 %v316, 0.6931472
    %v318 = vlog2.pop %v312
    %v319 = vmul.f32 %v318, 0.6931472
    %v320 = vlog2.pop %v313
    %v321 = vmul.f32 %v320, 0.6931472
    %v322 = vsel %vm87, %v315, 0.0
    %v323 = vsel %vm87, %v317, 0.0
    %v324 = vadd.f32 %v322, %v323
    %v325 = vsel %vm87, %v319, 0.0
    %v326 = vadd.f32 %v324, %v325
    %v327 = vsel %vm87, %v321, 0.0
    %v328 = vadd.f32 %v326, %v327
    %329 = vadd.xlane.f32.xlu0 %v328
    %v330 = vpop.xlane.xlu0 %329
    %v331 = vrot.slane %v330, 4
    %v332 = vadd.f32 %v330, %v331
    %v333 = vrot.slane %v332, 2
    %v334 = vadd.f32 %v332, %v333
    %v335 = vrot.slane %v334, 1
    %v336 = vadd.f32 %v334, %v335
    %s337 = vtos %v336
    %s338 = smul.f32 %s337, 2.0
    %s339 = ssub.f32 0.0, %s338
    %s340 = sadd.f32 %s339, %s309
    %s341 = ssub.f32 %s340, 32.0
    %s342 = smul.f32 %s341, -1.5
    %v343 = vstv %s342
    %vm344 = vcmask 0
    %345 = vst.msk [vmem:[#allocation10] sm:$0x1] %vm344, %v343
    // Predicated region
    $region18: #{tpu_custom_call.1} parent=1 // pred_check
      _
    $region19: #{tpu_custom_call.1} parent=1 // pred_check_branch
      %347 = sbr.rel (0) target = $region21
    $region20: #{tpu_custom_call.1} parent=1 // pred_region
      %s349 = ssub.s32 512, 512
      %350 = vsyncadd [#allocation4], %s349
      %s351 = sshll.u32 [#allocation7], 4
      %s352 = int_to_ptr.vmem [resolvable:$true] %s351
      %357 = dma.vmem_to_hbm [thread:$0]  %s352, 512, %s2, [#allocation4], 128, 128, 8
    $region21: #{tpu_custom_call.1} parent=1 // pred_fallthru
      _
    // Predicated region
    $region22: #{tpu_custom_call.1} parent=1 // pred_check
      _
    $region23: #{tpu_custom_call.1} parent=1 // pred_check_branch
      %359 = sbr.rel (0) target = $region25
    $region24: #{tpu_custom_call.1} parent=1 // pred_region
      %s361 = ssub.s32 512, 512
      %362 = vsyncadd [#allocation9], %s361
      %s363 = sshll.u32 [#allocation8], 4
      %s364 = int_to_ptr.vmem [resolvable:$true] %s363
      %369 = dma.vmem_to_hbm [thread:$0]  %s364, 512, %s3, [#allocation9], 128, 128, 8
    $region25: #{tpu_custom_call.1} parent=1 // pred_fallthru
      _
    // Predicated region
    $region26: #{tpu_custom_call.1} parent=1 // pred_check
      _
    $region27: #{tpu_custom_call.1} parent=1 // pred_check_branch
      %371 = sbr.rel (0) target = $region29
    $region28: #{tpu_custom_call.1} parent=1 // pred_region
      %s373 = ssub.s32 16, 16
      %374 = vsyncadd [#allocation9], %s373
      %s376 = sshll.u32 [#allocation10], 4
      %s377 = int_to_ptr.vmem [resolvable:$true] %s376
      %379 = dma.vmem_to_hbm [thread:$0]  %s377, 16, %s4, [#allocation9]
    $region29: #{tpu_custom_call.1} parent=1 // pred_fallthru
      _
    // Predicated region
    $region30: #{tpu_custom_call.1} parent=1 // pred_check
      _
    $region31: #{tpu_custom_call.1} parent=1 // pred_check_branch
      %381 = sbr.rel (0) target = $region33
    $region32: #{tpu_custom_call.1} parent=1 // pred_region
      %382 = dma.done [#allocation4], 512
    $region33: #{tpu_custom_call.1} parent=1 // pred_fallthru
      _
    // Predicated region
    $region34: #{tpu_custom_call.1} parent=1 // pred_check
      _
    $region35: #{tpu_custom_call.1} parent=1 // pred_check_branch
      %384 = sbr.rel (0) target = $region37
    $region36: #{tpu_custom_call.1} parent=1 // pred_region
      %385 = dma.done [#allocation9], 512
    $region37: #{tpu_custom_call.1} parent=1 // pred_fallthru
      _
    // Predicated region
    $region38: #{tpu_custom_call.1} parent=1 // pred_check
      _
    $region39: #{tpu_custom_call.1} parent=1 // pred_check_branch
      %387 = sbr.rel (0) target = $region41
    $region40: #{tpu_custom_call.1} parent=1 // pred_region
      %388 = dma.done [#allocation9], 16
    $region41: #{tpu_custom_call.1} parent=1 // pred_fallthru
      _
    %389 = vsyncpa [#allocation3], 1
    %390 = vsyncpa [#allocation6], 1
    %391 = vsyncpa [#allocation4], 1
    %392 = vsyncpa [#allocation9], 1

</llo_original>
